<compile_context>
chip_gen: v5e
topology: v5e:2x2
jax: 0.10.0
libtpu: 0.0.40
codegen_flags: <defaults>
</compile_context>

<pallas_src>
import numpy as np
import jax
import jax.numpy as jnp
from jax.experimental import pallas as pl
from jax.experimental.pallas import tpu as pltpu


# ----------------------------------------------------------------------------
# Base anchor generation (exactly mirrors the PyTorch/numpy reference).
# ----------------------------------------------------------------------------
def generate_anchors(base_size=16, ratios=None, scales=None):
    n_anchors = len(ratios) * len(scales)
    anchors = np.zeros((n_anchors, 4))
    anchors[:, 2:] = base_size * np.tile(scales, (2, len(ratios))).T
    areas = anchors[:, 2] * anchors[:, 3]
    anchors[:, 2] = np.sqrt(areas / np.repeat(ratios, len(scales)))
    anchors[:, 3] = anchors[:, 2] * np.repeat(ratios, len(scales))
    anchors[:, 0::2] -= np.tile(anchors[:, 2] * 0.5, (2, 1)).T
    anchors[:, 1::2] -= np.tile(anchors[:, 3] * 0.5, (2, 1)).T
    return anchors


# ----------------------------------------------------------------------------
# Trace-time per-lane constants for one level.
#   Slab layout: out[y, l], l = (x, a, c) flattened, L = W_cols*A*4, and
#       out[y, l] = const2[l] + mask[l] * y
#   const2 folds the base anchor, the x-shift (even coords) and the +0.5*stride
#   y-offset (odd coords); mask is stride on odd coords, 0 on even ones.
# ----------------------------------------------------------------------------
def _level_constants(base_anchors, w_cols, stride):
    A = base_anchors.shape[0]
    L = w_cols * A * 4
    stride_f = float(stride)
    x = np.arange(w_cols, dtype=np.float64)
    sx = (x + 1.5) * stride_f                                   # arange(1, W) quirk
    c_even = np.array([1.0, 0.0, 1.0, 0.0], dtype=np.float64)   # x1, y1, x2, y2
    c_odd = 1.0 - c_even
    const2 = (base_anchors[None, :, :]
              + sx[:, None, None] * c_even[None, None, :]
              + (0.5 * stride_f) * c_odd[None, None, :])        # (W_cols, A, 4)
    mask = np.broadcast_to(stride_f * c_odd, (w_cols, A, 4))
    const2 = const2.reshape(1, L).astype(np.float32)
    mask = np.ascontiguousarray(mask).reshape(1, L).astype(np.float32)
    return jnp.asarray(const2), jnp.asarray(mask)


# ----------------------------------------------------------------------------
# Fused Pallas kernel: one shared row-tile grid, one output slab per level.
#   out_l[y, l] = const2_l[l] + mask_l[l] * y
# ----------------------------------------------------------------------------
def _make_fused_kernel(level_meta, grid_size):
    n_levels = len(level_meta)

    def kernel(*refs):
        i = pl.program_id(0)
        for idx, (tile_h, nblocks) in enumerate(level_meta):
            const2_ref = refs[2 * idx]
            mask_ref = refs[2 * idx + 1]
            out_ref = refs[2 * n_levels + idx]
            if nblocks == grid_size:
                blk = i
            elif nblocks == 1:
                blk = 0
            else:
                # Small level: clamp and recompute the last block on late steps
                # (identical values -> safe under "parallel"/megacore splits).
                blk = jnp.minimum(i, nblocks - 1)
            # Row coordinate on a narrow (tile_h, 1) strip; +0.5 folded into const2.
            rows = jax.lax.broadcasted_iota(jnp.int32, (tile_h, 1), 0)
            y = (rows + blk * tile_h).astype(jnp.float32)
            out_ref[...] = const2_ref[...] + mask_ref[...] * y   # 1 mul + 1 add / vreg

    return kernel


_DEFAULT_TARGET_BYTES = 6 << 20   # output-block bytes for the largest level
_V7X_TARGET_BYTES = 8 << 20


def _pick_target_bytes():
    target = _DEFAULT_TARGET_BYTES
    try:
        info = pltpu.get_tpu_info()
        vmem = getattr(info, "vmem_capacity_bytes", None)
        # v7x-class parts (64 MiB VMEM, ~3.2 TB/s HBM) amortize per-step
        # overhead better with bigger output blocks.
        if vmem is not None and vmem <= (80 << 20):
            target = _V7X_TARGET_BYTES
    except Exception:
        pass
    return target


def _cdiv(a, b):
    return -(-a // b)


def _round_up8(a):
    return ((a + 7) // 8) * 8


def _fused_anchor_slabs(levels):
    """One pallas_call producing every level's lane-dense (H, L) float32 slab."""
    target = _pick_target_bytes()
    big = max(levels, key=lambda lv: lv["H"] * lv["L"])
    rows_target = max(8, ((target // (big["L"] * 4)) // 8) * 8)
    grid_size = _cdiv(big["H"], rows_target) if big["H"] > rows_target else 1
    if grid_size == 1 and big["H"] >= 16:
        grid_size = 2          # >=2 row tiles so v7x's two TensorCores both get work

    # Per-level tile heights: balanced, multiple of 8 (or the full level height).
    metas = []
    for lv in levels:
        h = lv["H"]
        tile_h = min(_round_up8(_cdiv(h, grid_size)), h)
        if tile_h >= h:
            tile_h, nblocks = h, 1
        else:
            nblocks = _cdiv(h, tile_h)
        metas.append((tile_h, nblocks))

    in_specs, operands = [], []
    for lv in levels:
        spec = pl.BlockSpec((1, lv["L"]), lambda i: (0, 0))
        in_specs += [spec, spec]
        operands += [lv["const2"], lv["mask"]]

    out_specs, out_shapes = [], []
    for lv, (tile_h, nblocks) in zip(levels, metas):
        out_specs.append(pl.BlockSpec(
            (tile_h, lv["L"]),
            lambda i, nb=nblocks: (jnp.minimum(i, nb - 1), 0)))
        out_shapes.append(jax.ShapeDtypeStruct((lv["H"], lv["L"]), jnp.float32))

    out_elems = sum(lv["H"] * lv["L"] for lv in levels)
    in_bytes = sum(2 * lv["L"] * 4 for lv in levels)
    block_bytes = sum(th * lv["L"] * 4 for (th, _), lv in zip(metas, levels))
    vmem_needed = 2 * (block_bytes + in_bytes)               # double-buffered
    vmem_limit = int(min(max(2 * vmem_needed + (4 << 20), 32 << 20), 56 << 20))

    outs = pl.pallas_call(
        _make_fused_kernel(tuple(metas), grid_size),
        out_shape=tuple(out_shapes),
        grid=(grid_size,),
        in_specs=in_specs,
        out_specs=tuple(out_specs),
        compiler_params=pltpu.CompilerParams(
            dimension_semantics=("parallel",),
            vmem_limit_bytes=vmem_limit),
        cost_estimate=pl.CostEstimate(
            flops=2 * out_elems, transcendentals=0,
            bytes_accessed=4 * out_elems + in_bytes),
    )(*operands)
    if not isinstance(outs, (tuple, list)):
        outs = (outs,)
    return list(outs)


# ----------------------------------------------------------------------------
# Module-equivalent wrapper.
# ----------------------------------------------------------------------------
class Anchors:
    def __init__(self, pyramid_levels=None, strides=None, base_sizes=None,
                 ratios=None, scales=None):
        self.pyramid_levels = [3, 4, 5, 6, 7] if pyramid_levels is None else pyramid_levels
        self.strides = [2 ** x for x in self.pyramid_levels] if strides is None else strides
        self.base_sizes = [2 ** (x + 2) for x in self.pyramid_levels] if base_sizes is None else base_sizes
        self.ratios = np.array([0.5, 1, 2]) if ratios is None else ratios
        self.scales = np.array([2 ** 0, 2 ** (1.0 / 3.0), 2 ** (2.0 / 3.0)]) if scales is None else scales

    def __call__(self, img):
        # img: NCHW; only the spatial shape matters.
        img_shape = np.array(img.shape[2:])
        img_shapes = [(img_shape + 2 ** x - 1) // (2 ** x) for x in self.pyramid_levels]

        levels = []
        for idx, _ in enumerate(self.pyramid_levels):
            base = generate_anchors(base_size=self.base_sizes[idx],
                                    ratios=self.ratios, scales=self.scales)
            h, w = int(img_shapes[idx][0]), int(img_shapes[idx][1])
            w_cols = w - 1                      # reference quirk: np.arange(1, W)
            if h <= 0 or w_cols <= 0:
                continue                        # level contributes zero anchors
            A = base.shape[0]
            const2, mask = _level_constants(base, w_cols, self.strides[idx])
            levels.append(dict(H=h, Wc=w_cols, A=A, L=w_cols * A * 4,
                               const2=const2, mask=mask))

        if not levels:
            return jnp.zeros((1, 0, 4), jnp.float32)

        slabs = _fused_anchor_slabs(levels)
        # Row-major (y, x, a, c) -> (K*A, 4): contiguous, copy-free reshape.
        pieces = [s.reshape(lv["H"] * lv["Wc"] * lv["A"], 4)
                  for s, lv in zip(slabs, levels)]
        # TODO(synk): the concat below is the one remaining extra HBM read+write
        # pass.  Writing each slab straight into one flat buffer from the kernel
        # would need a reshaping DMA ((tile_h, L) VMEM tile -> 1-D slice of the
        # flat buffer), which Pallas DMAs cannot express; per-row DMAs would add
        # per-descriptor overhead, so a single concatenate is kept instead.
        all_anchors = pieces[0] if len(pieces) == 1 else jnp.concatenate(pieces, axis=0)
        return all_anchors[None, :, :]          # (1, N, 4) float32


# ----------------------------------------------------------------------------
# Pure-numpy reference (exactly the PyTorch module's numpy path) for checking.
# ----------------------------------------------------------------------------
def _shift_ref(shape, stride, anchors):
    shift_x = (np.arange(1, shape[1]) + 0.5) * stride
    shift_y = (np.arange(0, shape[0]) + 0.5) * stride
    shift_x, shift_y = np.meshgrid(shift_x, shift_y)
    shifts = np.vstack((shift_x.ravel(), shift_y.ravel(),
                        shift_x.ravel(), shift_y.ravel())).transpose()
    A = anchors.shape[0]
    K = shifts.shape[0]
    all_anchors = (anchors.reshape((1, A, 4)) +
                   shifts.reshape((1, K, 4)).transpose((1, 0, 2)))
    return all_anchors.reshape((K * A, 4))


def _anchors_ref(img_shape_hw, levels, strides, base_sizes, ratios, scales):
    img_shape = np.array(img_shape_hw)
    img_shapes = [(img_shape + 2 ** x - 1) // (2 ** x) for x in levels]
    out = np.zeros((0, 4)).astype(np.float32)
    for idx in range(len(levels)):
        a = generate_anchors(base_size=base_sizes[idx], ratios=ratios, scales=scales)
        out = np.append(out, _shift_ref(img_shapes[idx], strides[idx], a), axis=0)
    return np.expand_dims(out, 0).astype(np.float32)


if __name__ == "__main__":
    key = jax.random.PRNGKey(0)
    module = Anchors()

    # Primary small example (NCHW): only level 3 contributes anchors.
    img = jax.random.normal(key, (2, 4, 16, 16), dtype=jnp.float32)
    out = jax.block_until_ready(module(img))
    ref = _anchors_ref(img.shape[2:], module.pyramid_levels, module.strides,
                       module.base_sizes, module.ratios, module.scales)
    assert out.shape == ref.shape, (out.shape, ref.shape)
    assert out.dtype == jnp.float32
    np.testing.assert_allclose(np.asarray(out), ref, rtol=1e-5, atol=1e-3)

    # Second small shape: multi-level fusion, ragged last row-tiles, clamped
    # small-level blocks and a skipped empty level.
    img2 = jax.random.normal(key, (1, 3, 136, 112), dtype=jnp.float32)
    out2 = jax.block_until_ready(module(img2))
    ref2 = _anchors_ref(img2.shape[2:], module.pyramid_levels, module.strides,
                        module.base_sizes, module.ratios, module.scales)
    assert out2.shape == ref2.shape, (out2.shape, ref2.shape)
    np.testing.assert_allclose(np.asarray(out2), ref2, rtol=1e-5, atol=1e-3)

    print("KERNEL_OK")
</pallas_src>

<mosaic_0001>
module attributes {stable_mosaic.version = 11 : i64} {
  func.func @kernel(%arg0: i32, %arg1: memref<1x36xf32, #tpu.memory_space<vmem>>, %arg2: memref<1x36xf32, #tpu.memory_space<vmem>>, %arg3: memref<2x36xf32, #tpu.memory_space<vmem>>) attributes {dimension_semantics = [#tpu.dimension_semantics<parallel>], iteration_bounds = array<i64: 1>, scalar_prefetch = 0 : i64, scratch_operands = 0 : i64, tpu.core_type = #tpu.core_type<tc>, window_params = [{pipeline_mode = #tpu.pipeline_mode<synchronous>, transform_indices = @transform_0, window_bounds = array<i64: 1, 36>}, {pipeline_mode = #tpu.pipeline_mode<synchronous>, transform_indices = @transform_1, window_bounds = array<i64: 1, 36>}, {transform_indices = @transform_2, window_bounds = array<i64: 2, 36>}]} {
    %0 = tpu.iota {dimensions = array<i32: 0>} : vector<2x1xi32>
    %c2_i32 = arith.constant 2 : i32
    %1 = arith.muli %arg0, %c2_i32 : i32
    %2 = vector.broadcast %1 : i32 to vector<2x1xi32>
    %3 = arith.addi %0, %2 : vector<2x1xi32>
    %4 = arith.sitofp %3 : vector<2x1xi32> to vector<2x1xf32>
    %c0 = arith.constant 0 : index
    %c0_0 = arith.constant 0 : index
    %5 = vector.load %arg1[%c0, %c0_0] : memref<1x36xf32, #tpu.memory_space<vmem>>, vector<1x36xf32>
    %c0_1 = arith.constant 0 : index
    %c0_2 = arith.constant 0 : index
    %6 = vector.load %arg2[%c0_1, %c0_2] : memref<1x36xf32, #tpu.memory_space<vmem>>, vector<1x36xf32>
    %7 = vector.broadcast %6 : vector<1x36xf32> to vector<2x36xf32>
    %8 = vector.broadcast %4 : vector<2x1xf32> to vector<2x36xf32>
    %9 = arith.mulf %7, %8 : vector<2x36xf32>
    %10 = vector.broadcast %5 : vector<1x36xf32> to vector<2x36xf32>
    %11 = arith.addf %10, %9 : vector<2x36xf32>
    %c0_3 = arith.constant 0 : index
    %c0_4 = arith.constant 0 : index
    %12 = vector.load %arg3[%c0_3, %c0_4] : memref<2x36xf32, #tpu.memory_space<vmem>>, vector<2x36xf32>
    tpu.vector_store %arg3[%c0_3, %c0_4], %11 {strides = array<i32>} : memref<2x36xf32, #tpu.memory_space<vmem>>, vector<2x36xf32>,
    return
  }
  func.func @transform_0(%arg0: i32) -> (i32, i32) {
    %c0_i32 = arith.constant 0 : i32
    %c0_i32_0 = arith.constant 0 : i32
    %c0_i32_1 = arith.constant 0 : i32
    return %c0_i32, %c0_i32_0 : i32, i32
  }
  func.func @transform_1(%arg0: i32) -> (i32, i32) {
    %c0_i32 = arith.constant 0 : i32
    %c0_i32_0 = arith.constant 0 : i32
    %c0_i32_1 = arith.constant 0 : i32
    return %c0_i32, %c0_i32_0 : i32, i32
  }
  func.func @transform_2(%arg0: i32) -> (i32, i32) {
    %c0_i32 = arith.constant 0 : i32
    %0 = arith.minsi %arg0, %c0_i32 : i32
    %c0_i32_0 = arith.constant 0 : i32
    %c0_i32_1 = arith.constant 0 : i32
    return %0, %c0_i32_0 : i32, i32
  }
}

</mosaic_0001>

<llo_original>
// kernel: tpu_custom_call.1
$region0: #{tpu_custom_call.1}
  #allocation0 [shape = 'u32[]', space=smem, size = 0x4, offset = 0x4, fixed_abs, tag = 'smem constant byte address 0x4 - core index']
  #allocation1 [shape = 'u32[72,128]{1,0:T(1,128)}', space=vmem, size = 0x9000, scoped, tag = 'internal scratch']
  %s0 = inlined_call_operand.hbm [shape: f32[1,36], index: 0, kind: input, shape index: {}]
  %s1 = inlined_call_operand.hbm [shape: f32[1,36], index: 1, kind: input, shape index: {}]
  %s2 = inlined_call_operand.hbm [shape: f32[2,36], index: 2, kind: output, shape index: {}]
  %s3 = sld [smem:[#allocation0]]
  $region26: #{tpu_custom_call.1} parent=0
    _
  %s5 = ssub.s32 1, %s3
  %s6 = scalar_select 0, %s5, %s3
  $region1: #{tpu_custom_call.1} parent=0
    #allocation2 [shape = 'u8[512]{0}', space=vmem, size = 0x400, scoped, tag = 'input window, operand 0, single buffered']
    #allocation3 [shape = 's32[1]{0}', space=sflag, size = 0x4, scoped, tag = 'scoped memory for tpu_custom_call.1']
    #allocation4 [shape = 's32[1]{0}', space=sflag, size = 0x4, scoped, tag = 'scoped memory for tpu_custom_call.1']
    #allocation5 [shape = 'u8[512]{0}', space=vmem, size = 0x400, scoped, tag = 'input window, operand 1, single buffered']
    #allocation6 [shape = 's32[1]{0}', space=sflag, size = 0x4, scoped, tag = 'scoped memory for tpu_custom_call.1']
    #allocation7 [shape = 'u8[1024]{0}', space=vmem, size = 0x400, scoped, tag = 'output window, operand 0, single buffered']
    %7 = vsyncpa [#allocation3], 0
    %8 = vsyncpa [#allocation6], 0
    %9 = vsyncpa [#allocation4], 0
    // Predicated region
    $region2: #{tpu_custom_call.1} parent=1 // pred_check
      _
    $region3: #{tpu_custom_call.1} parent=1 // pred_check_branch
      %11 = sbr.rel (0) target = $region5
    $region4: #{tpu_custom_call.1} parent=1 // pred_region
      %13 = vsyncadd [#allocation3], 0
      %s15 = sshll.u32 %s0, 4
      %s16 = int_to_ptr.hbm [resolvable:$true] %s15
      %s17 = sshll.u32 [#allocation2], 4
      %s18 = int_to_ptr.vmem [resolvable:$true] %s17
      %20 = dma.hbm_to_vmem [thread:$0]  %s16, 16, %s18, [#allocation3]
    $region5: #{tpu_custom_call.1} parent=1 // pred_fallthru
      _
    // Predicated region
    $region6: #{tpu_custom_call.1} parent=1 // pred_check
      _
    $region7: #{tpu_custom_call.1} parent=1 // pred_check_branch
      %22 = sbr.rel (0) target = $region9
    $region8: #{tpu_custom_call.1} parent=1 // pred_region
      %24 = vsyncadd [#allocation6], 0
      %s26 = sshll.u32 %s1, 4
      %s27 = int_to_ptr.hbm [resolvable:$true] %s26
      %s28 = sshll.u32 [#allocation5], 4
      %s29 = int_to_ptr.vmem [resolvable:$true] %s28
      %31 = dma.hbm_to_vmem [thread:$0]  %s27, 16, %s29, [#allocation6]
    $region9: #{tpu_custom_call.1} parent=1 // pred_fallthru
      _
    // Predicated region
    $region10: #{tpu_custom_call.1} parent=1 // pred_check
      _
    $region11: #{tpu_custom_call.1} parent=1 // pred_check_branch
      %33 = sbr.rel (0) target = $region13
    $region12: #{tpu_custom_call.1} parent=1 // pred_region
      %35 = dma.done [#allocation3], 16
    $region13: #{tpu_custom_call.1} parent=1 // pred_fallthru
      _
    // Predicated region
    $region14: #{tpu_custom_call.1} parent=1 // pred_check
      _
    $region15: #{tpu_custom_call.1} parent=1 // pred_check_branch
      %37 = sbr.rel (0) target = $region17
    $region16: #{tpu_custom_call.1} parent=1 // pred_region
      %39 = dma.done [#allocation6], 16
    $region17: #{tpu_custom_call.1} parent=1 // pred_fallthru
      _
    %v40 = vlaneseq
    %v41 = vshrl.u32 %v40, 7
    %s42 = smul.u32 0, 2
    %v43 = vstv %s42
    %v44 = vadd.s32 %v41, %v43
    %v45 = vcvt.s32.f32 %v44
    %v46 = vld [vmem:[#allocation2] sm:$0x1]
    %v47 = vld [vmem:[#allocation5] sm:$0x1]
    %v49 = vperm.slane %v47, 0
    %v51 = vmul.f32 %v49, %v45
    %v53 = vperm.slane %v46, 0
    %v55 = vadd.f32 %v53, %v51
    %vm56 = vcmask 287744
    %57 = vst.msk [vmem:[#allocation7] sm:$0x3] %vm56, %v55
    // Predicated region
    $region18: #{tpu_custom_call.1} parent=1 // pred_check
      _
    $region19: #{tpu_custom_call.1} parent=1 // pred_check_branch
      %59 = sbr.rel (0) target = $region21
    $region20: #{tpu_custom_call.1} parent=1 // pred_region
      %61 = vsyncadd [#allocation4], 0
      %s63 = sshll.u32 [#allocation7], 4
      %s64 = int_to_ptr.vmem [resolvable:$true] %s63
      %s65 = sshll.u32 %s2, 4
      %s66 = int_to_ptr.hbm [resolvable:$true] %s65
      %68 = dma.vmem_to_hbm [thread:$0]  %s64, 32, %s66, [#allocation4]
    $region21: #{tpu_custom_call.1} parent=1 // pred_fallthru
      _
    // Predicated region
    $region22: #{tpu_custom_call.1} parent=1 // pred_check
      _
    $region23: #{tpu_custom_call.1} parent=1 // pred_check_branch
      %70 = sbr.rel (0) target = $region25
    $region24: #{tpu_custom_call.1} parent=1 // pred_region
      %72 = dma.done [#allocation4], 32
    $region25: #{tpu_custom_call.1} parent=1 // pred_fallthru
      _
    %73 = vsyncpa [#allocation3], 1
    %74 = vsyncpa [#allocation6], 1
    %75 = vsyncpa [#allocation4], 1

</llo_original>
